<compile_context>
chip_gen: v5e
topology: v5e:2x2
jax: 0.10.0
libtpu: 0.0.40
codegen_flags: <defaults>
</compile_context>

<pallas_src>
import functools

import jax
import jax.numpy as jnp
from jax.experimental import pallas as pl
from jax.experimental.pallas import tpu as pltpu

_LEAKY_SLOPE = 0.01                                        # nn.LeakyReLU() default
_LANE_CHOICES = (8192, 4096, 2048, 1024, 512, 256, 128)    # lane-dense trailing dims
_ACTIVATIONS = ("relu", "leakyrelu", "tanh", "sigmoid")


def _round_up(v: int, m: int) -> int:
    return (v + m - 1) // m * m


@functools.lru_cache(maxsize=1)
def _chip_config():
    """Returns (block_bytes, vmem_limit_bytes_or_None, native_bf16_transcendentals)."""
    kind = ""
    try:
        kind = jax.devices()[0].device_kind.lower()
    except Exception:
        pass
    if "v7" in kind:
        # ~3.2 TB/s HBM: larger blocks to amortize the ~0.35 us/step overhead.
        # 4 x 5 MiB (in+out, double-buffered) exceeds the 32 MiB scoped default,
        # so raise the scoped limit (64 MiB physical on v7x).
        return 5 * 1024 * 1024, 40 << 20, True
    if "v6" in kind:
        # 4 MiB blocks -> 16 MiB with double-buffering; fits 32 MiB scoped default.
        return 4 * 1024 * 1024, None, True
    # v5e (16 MiB scoped default) and unknown / older chips: stay conservative.
    return 3 * 1024 * 1024, None, False


def _activation_kernel(x_ref, o_ref, *, activation: str, upcast: bool):
    x = x_ref[...]
    if activation == "relu":
        y = jnp.maximum(x, jnp.zeros_like(x))
    elif activation == "leakyrelu":
        # x >= 0 vs PyTorch's x > 0: outputs are identical at x == 0.
        y = jnp.where(x >= 0, x, x * jnp.asarray(_LEAKY_SLOPE, x.dtype))
    else:  # tanh / sigmoid on the EUP
        xc = x.astype(jnp.float32) if upcast else x
        y = jnp.tanh(xc) if activation == "tanh" else jax.nn.sigmoid(xc)
        y = y.astype(x.dtype)
    o_ref[...] = y


def _choose_block_rows(rows: int, cols: int, itemsize: int, block_bytes: int) -> int:
    packing = 8 * max(1, 4 // itemsize)          # sublane packing: 8 f32, 16 bf16, 32 int8
    row_bytes = cols * itemsize
    target = max(packing, (block_bytes // max(row_bytes, 1)) // packing * packing)
    # A block equal to the full row extent is always legal; tiled blocks must be a
    # multiple of the packed-sublane factor.
    block_rows = rows if target >= rows else target
    # Ensure >=2 (and preferably an even number of) programs when there are enough
    # rows, so v7x's two TensorCores both stream this purely mem-bound kernel.
    if rows >= 2 * packing:
        g = max(2, pl.cdiv(rows, block_rows))
        g += g % 2
        block_rows = min(block_rows, _round_up(pl.cdiv(rows, g), packing))
    return max(block_rows, 1)


@functools.partial(jax.jit, static_argnames=("activation",))
def activation_layer(x: jax.Array, activation: str) -> jax.Array:
    """ActivatonLayer forward pass. Works for any shape (module uses NCHW)."""
    if activation not in _ACTIVATIONS:
        # PyTorch module: self.activation is None -> return x unchanged.
        return x

    orig_shape = x.shape
    orig_dtype = x.dtype
    n = x.size
    if n == 0:
        return x
    itemsize = jnp.dtype(orig_dtype).itemsize
    block_bytes, vmem_limit, native_bf16 = _chip_config()
    packing = 8 * max(1, 4 // itemsize)

    # ---- Zero-copy lane-dense 2-D view --------------------------------------
    pad = 0
    if n % 128 == 0:
        cols = next(c for c in _LANE_CHOICES if n % c == 0)
        rows = n // cols
    else:
        # Collapse trailing dims until we have >=128 lanes; still a zero-copy
        # reshape, and a full-trailing-dim BlockSpec is legal even when cols is
        # not a multiple of 128 (just masked partial vst) -- far cheaper than the
        # two extra full HBM passes a pad+slice fallback would cost.
        cols = 1
        dims = list(orig_shape)
        while dims and cols < 128:
            cols *= dims.pop()
        rows = n // cols
        if cols * itemsize * packing > block_bytes:
            # Last resort (e.g. a huge oddly-sized 1-D input): pad to 128 lanes.
            # Costs extra HBM passes, but essentially never triggers for the
            # module's NCHW activation tensors.
            cols = 128
            rows = _round_up(n, cols) // cols
            pad = rows * cols - n

    if pad:
        slab = jnp.pad(x.reshape(-1), (0, pad)).reshape(rows, cols)
    else:
        slab = x.reshape(rows, cols)

    block_rows = _choose_block_rows(rows, cols, itemsize, block_bytes)
    grid = (pl.cdiv(rows, block_rows),)

    # f32 upcast only where needed: v6e/v7x have bf16 VPU/EUP paths.
    upcast = (orig_dtype != jnp.float32) and not (
        native_bf16 and orig_dtype == jnp.bfloat16
    )
    kernel = functools.partial(_activation_kernel, activation=activation, upcast=upcast)

    cp_kwargs = dict(dimension_semantics=("parallel",))
    if vmem_limit is not None:
        cp_kwargs["vmem_limit_bytes"] = vmem_limit

    out = pl.pallas_call(
        kernel,
        out_shape=jax.ShapeDtypeStruct((rows, cols), orig_dtype),
        grid_spec=pltpu.PrefetchScalarGridSpec(
            num_scalar_prefetch=0,
            grid=grid,
            in_specs=[pl.BlockSpec((block_rows, cols), lambda i: (i, 0))],
            out_specs=pl.BlockSpec((block_rows, cols), lambda i: (i, 0)),
        ),
        compiler_params=pltpu.CompilerParams(**cp_kwargs),
        cost_estimate=pl.CostEstimate(
            flops=n,
            transcendentals=n if activation in ("tanh", "sigmoid") else 0,
            bytes_accessed=2 * n * itemsize,
        ),
    )(slab)

    if pad:
        # Note: pad lanes may hold e.g. sigmoid(0)=0.5 before being sliced away —
        # harmless, they never reach the caller.
        out = out.reshape(-1)[:n]
    return out.reshape(orig_shape)


def _reference(x, activation):
    if activation == "relu":
        return jnp.maximum(x, 0).astype(x.dtype)
    if activation == "leakyrelu":
        return jnp.where(x >= 0, x, x * jnp.asarray(_LEAKY_SLOPE, x.dtype))
    if activation == "tanh":
        return jnp.tanh(x.astype(jnp.float32)).astype(x.dtype)
    if activation == "sigmoid":
        return jax.nn.sigmoid(x.astype(jnp.float32)).astype(x.dtype)
    return x


if __name__ == "__main__":
    key = jax.random.PRNGKey(0)
    k1, k2, k3, k4 = jax.random.split(key, 4)

    test_inputs = [
        # Small NCHW matching the module's typical use (single-block path).
        jax.random.normal(k1, (2, 4, 16, 16), dtype=jnp.float32),
        # Odd shape -> exercises the zero-copy collapsed-trailing-dim fallback.
        jax.random.normal(k2, (2, 3, 17, 19), dtype=jnp.float32),
        # Larger shape -> multi-block grid with an even program count and a
        # partial (masked) last block.
        jax.random.normal(k3, (2, 4, 64, 640), dtype=jnp.float32),
        # bf16 -> exercises dtype-aware packing and (on v6e/v7x) native bf16 EUP.
        jax.random.normal(k4, (2, 4, 32, 64), dtype=jnp.bfloat16),
    ]
    activations = ["relu", "leakyrelu", "tanh", "sigmoid", "none"]

    ok = True
    for x in test_inputs:
        for act in activations:
            y = jax.block_until_ready(activation_layer(x, act))
            ref = _reference(x, act)
            if y.shape != x.shape or y.dtype != x.dtype:
                ok = False
                print(f"SHAPE/DTYPE MISMATCH for activation={act}, shape={x.shape}")
                continue
            tol = 1e-2 if x.dtype == jnp.bfloat16 else 1e-6
            if not jnp.allclose(
                y.astype(jnp.float32), ref.astype(jnp.float32), atol=tol, rtol=tol
            ):
                ok = False
                print(f"VALUE MISMATCH for activation={act}, shape={x.shape}")

    if ok:
        print("KERNEL_OK")
</pallas_src>

<mosaic_0001>
module attributes {stable_mosaic.version = 11 : i64} {
  func.func @_activation_kernel(%arg0: i32, %arg1: memref<1x2048xf32, #tpu.memory_space<vmem>>, %arg2: memref<1x2048xf32, #tpu.memory_space<vmem>>) attributes {dimension_semantics = [#tpu.dimension_semantics<parallel>], iteration_bounds = array<i64: 1>, scalar_prefetch = 0 : i64, scratch_operands = 0 : i64, tpu.core_type = #tpu.core_type<tc>, window_params = [{transform_indices = @transform_0, window_bounds = array<i64: 1, 2048>}, {transform_indices = @transform_1, window_bounds = array<i64: 1, 2048>}]} {
    %c0 = arith.constant 0 : index
    %c0_0 = arith.constant 0 : index
    %0 = vector.load %arg1[%c0, %c0_0] : memref<1x2048xf32, #tpu.memory_space<vmem>>, vector<1x2048xf32>
    %cst = arith.constant 0.000000e+00 : f32
    %1 = vector.broadcast %cst : f32 to vector<1x2048xf32>
    %2 = arith.maximumf %0, %1 : vector<1x2048xf32>
    %c0_1 = arith.constant 0 : index
    %c0_2 = arith.constant 0 : index
    %3 = vector.load %arg2[%c0_1, %c0_2] : memref<1x2048xf32, #tpu.memory_space<vmem>>, vector<1x2048xf32>
    tpu.vector_store %arg2[%c0_1, %c0_2], %2 {strides = array<i32>} : memref<1x2048xf32, #tpu.memory_space<vmem>>, vector<1x2048xf32>,
    return
  }
  func.func @transform_0(%arg0: i32) -> (i32, i32) {
    %c0_i32 = arith.constant 0 : i32
    %c0_i32_0 = arith.constant 0 : i32
    return %arg0, %c0_i32 : i32, i32
  }
  func.func @transform_1(%arg0: i32) -> (i32, i32) {
    %c0_i32 = arith.constant 0 : i32
    %c0_i32_0 = arith.constant 0 : i32
    return %arg0, %c0_i32 : i32, i32
  }
}

</mosaic_0001>

<llo_original>
// kernel: activation_layer.1
$region0: #{activation_layer.1}
  #allocation0 [shape = 'u32[]', space=smem, size = 0x4, offset = 0x4, fixed_abs, tag = 'smem constant byte address 0x4 - core index']
  #allocation1 [shape = 'u32[72,128]{1,0:T(1,128)}', space=vmem, size = 0x9000, scoped, tag = 'internal scratch']
  %s0 = inlined_call_operand.vmem [shape: f32[1,2048], index: 0, kind: input, shape index: {}]
  %s1 = inlined_call_operand.vmem [shape: f32[1,2048], index: 1, kind: output, shape index: {}]
  %s2 = sld [smem:[#allocation0]]
  $region14: #{activation_layer.1} parent=0
    _
  %s4 = ssub.s32 1, %s2
  %s5 = scalar_select 0, %s4, %s2
  // Predicated region
  $region2: #{activation_layer.1} parent=0 // pred_check
    _
  $region3: #{activation_layer.1} parent=0 // pred_check_branch
    %7 = sbr.rel (0) target = $region5
  $region4: #{activation_layer.1} parent=0 // pred_region
    _
  $region5: #{activation_layer.1} parent=0 // pred_fallthru
    _
  %v8 = vld [vmem:[%s0] sm:$0xff]
  %v9 = vld [vmem:[%s0 + $0x8] sm:$0xff]
  %v10 = vmax.f32 %v8, 0.0
  %v11 = vmax.f32 %v9, 0.0
  %12 = vst [vmem:[%s1] sm:$0xff] %v10
  %13 = vst [vmem:[%s1 + $0x8] sm:$0xff] %v11
  // Predicated region
  $region6: #{activation_layer.1} parent=0 // pred_check
    _
  $region7: #{activation_layer.1} parent=0 // pred_check_branch
    %15 = sbr.rel (0) target = $region9
  $region8: #{activation_layer.1} parent=0 // pred_region
    _
  $region9: #{activation_layer.1} parent=0 // pred_fallthru
    _
  // Predicated region
  $region10: #{activation_layer.1} parent=0 // pred_check
    _
  $region11: #{activation_layer.1} parent=0 // pred_check_branch
    %17 = sbr.rel (0) target = $region13
  $region12: #{activation_layer.1} parent=0 // pred_region
    _
  $region13: #{activation_layer.1} parent=0 // pred_fallthru
    _

</llo_original>
